<compile_context>
chip_gen: v7x
topology: tpu7x:2x2x1
jax: 0.10.0
libtpu: 0.0.40
codegen_flags: <defaults>
</compile_context>

<pallas_src>
import functools

import jax
import jax.numpy as jnp
from jax import lax
from jax.experimental import pallas as pl
from jax.experimental.pallas import tpu as pltpu

_SUBLANE = 8
_LANE = 128


# ---------------------------------------------------------------------------
# Pure-JAX reference (PyTorch iwt_init semantics).
# ---------------------------------------------------------------------------
def iwt_ref(x):
    fb, c, hh, ww = x.shape
    b = fb // 4
    x = x.astype(jnp.float32)
    x1 = x[0 * b:1 * b] / 2
    x2 = x[1 * b:2 * b] / 2
    x3 = x[2 * b:3 * b] / 2
    x4 = x[3 * b:4 * b] / 2
    h = jnp.zeros((b, c, 2 * hh, 2 * ww), jnp.float32)
    h = h.at[:, :, 0::2, 0::2].set(x1 - x2 - x3 + x4)
    h = h.at[:, :, 1::2, 0::2].set(x1 - x2 + x3 - x4)
    h = h.at[:, :, 0::2, 1::2].set(x1 + x2 - x3 - x4)
    h = h.at[:, :, 1::2, 1::2].set(x1 + x2 + x3 + x4)
    return h


# ---------------------------------------------------------------------------
# Tiling helpers.
# ---------------------------------------------------------------------------
def _default_vmem_budget():
    # Generation aware: v7x has 64 MiB VMEM/TC vs 128 MiB on v5e/v6e.  Keep the
    # double-buffered working set under the smallest scoped default (v5e 16MiB).
    cap = 128 * 1024 * 1024
    try:
        cap = int(pltpu.get_tpu_info().vmem_capacity_bytes)
    except Exception:
        pass
    return min(10 * 1024 * 1024, cap // 8)


def _choose_tr(rows, ww, in_dtype, out_dtype, budget_bytes):
    """Rows per block over the flattened (B*C*H, ...) row space."""
    in_bytes = 4 * ww * jnp.dtype(in_dtype).itemsize      # 4 sub-bands per row
    out_bytes = 4 * ww * jnp.dtype(out_dtype).itemsize    # 2 parities x 2W per row
    per_row = 2 * (in_bytes + out_bytes)                   # double buffered
    per_row = per_row * 3 // 2                             # headroom for temporaries
    tr = max(_SUBLANE, int(budget_bytes // max(per_row, 1)) // _SUBLANE * _SUBLANE)
    # Keep >= ~8 grid steps whenever rows allow (pipelining + megacore sharding).
    cap = pl.cdiv(rows, 8)
    cap = max(_SUBLANE, ((cap + _SUBLANE - 1) // _SUBLANE) * _SUBLANE)
    tr = min(tr, cap)
    if rows <= tr:
        return rows                                        # full dim -> legal block
    return max(_SUBLANE, (tr // _SUBLANE) * _SUBLANE)


def _pow2_chunks(w):
    """Decompose W into power-of-two column chunks, each <= 128 lanes."""
    chunks = [_LANE] * (w // _LANE)
    rem = w % _LANE
    bit = _LANE >> 1
    while rem:
        if rem & bit:
            chunks.append(bit)
            rem -= bit
        bit >>= 1
    return tuple(chunks)


# ---------------------------------------------------------------------------
# In-register lane interleave: out[:, 2j] = even[:, j], out[:, 2j+1] = odd[:, j].
# Implemented as a log2(n) butterfly of lane rotations + parity selects (all on
# XLU/VPU slots, which have huge slack in this HBM-bound kernel).
# ---------------------------------------------------------------------------
def _interleave_lanes(even, odd):
    n = even.shape[-1]
    assert n & (n - 1) == 0, "chunk width must be a power of two"
    x = jnp.concatenate([even, odd], axis=-1)              # alternating n-blocks
    if n == 1:
        return x
    two_n = 2 * n
    lane = lax.broadcasted_iota(jnp.int32, (1, two_n), 1)
    g = n
    while g >= 2:
        h = g // 2
        q = lane % (2 * g)
        take_hi = (q >= h) & (q < g)        # these lanes take the value from l + h
        take_lo = (q >= g) & (q < g + h)    # these lanes take the value from l - h
        from_hi = pltpu.roll(x, (two_n - h) % two_n, axis=1)   # [:, l] = x[:, l + h]
        from_lo = pltpu.roll(x, h, axis=1)                      # [:, l] = x[:, l - h]
        x = jnp.where(take_hi, from_hi, jnp.where(take_lo, from_lo, x))
        g = h
    return x


# ---------------------------------------------------------------------------
# Fused kernel: one HBM pass, output already pixel-interleaved.
#   x_ref: (4, tr, W)  -- sub-bands x1..x4 for tr flattened (b, c, i) rows.
#   o_ref: (tr, 4W)    -- [row-parity 0 (2W interleaved) | row-parity 1 (2W)].
# ---------------------------------------------------------------------------
def _iwt_fused_kernel(x_ref, o_ref, *, w, chunks):
    off = 0
    for cw in chunks:
        x1 = x_ref[0, :, off:off + cw].astype(jnp.float32)
        x2 = x_ref[1, :, off:off + cw].astype(jnp.float32)
        x3 = x_ref[2, :, off:off + cw].astype(jnp.float32)
        x4 = x_ref[3, :, off:off + cw].astype(jnp.float32)
        # Butterfly: 8 add/sub + 4 mul.
        s12 = (x1 + x2) * 0.5
        d12 = (x1 - x2) * 0.5
        s34 = (x3 + x4) * 0.5
        d34 = (x3 - x4) * 0.5
        # even output rows: cols (even, odd) = (d12 - d34, s12 - s34)
        # odd  output rows: cols (even, odd) = (d12 + d34, s12 + s34)
        row0 = _interleave_lanes(d12 - d34, s12 - s34)
        row1 = _interleave_lanes(d12 + d34, s12 + s34)
        o_ref[:, 2 * off:2 * off + 2 * cw] = row0.astype(o_ref.dtype)
        o_ref[:, 2 * w + 2 * off:2 * w + 2 * off + 2 * cw] = row1.astype(o_ref.dtype)
        off += cw


def _iwt_fused(xf, b, c, hh, ww, tr, out_dtype):
    rows = b * c * hh
    grid = (pl.cdiv(rows, tr),)
    kernel = functools.partial(_iwt_fused_kernel, w=ww, chunks=_pow2_chunks(ww))
    yf = pl.pallas_call(
        kernel,
        out_shape=jax.ShapeDtypeStruct((rows, 4 * ww), out_dtype),
        grid_spec=pltpu.PrefetchScalarGridSpec(
            num_scalar_prefetch=0,
            grid=grid,
            in_specs=[pl.BlockSpec((4, tr, ww), lambda r: (0, r, 0))],
            out_specs=pl.BlockSpec((tr, 4 * ww), lambda r: (r, 0)),
        ),
        compiler_params=pltpu.CompilerParams(dimension_semantics=("parallel",)),
    )(xf)
    # Free (layout-preserving) reshape: (B*C*H, 2*2W) -> (B, C, 2H, 2W).
    return yf.reshape(b, c, 2 * hh, 2 * ww)


# ---------------------------------------------------------------------------
# Fallback: proven two-pass path (band kernel + XLA interleave epilogue).
# ---------------------------------------------------------------------------
def _iwt_band_kernel(x_ref, o_ref):
    x1 = x_ref[0].astype(jnp.float32)
    x2 = x_ref[1].astype(jnp.float32)
    x3 = x_ref[2].astype(jnp.float32)
    x4 = x_ref[3].astype(jnp.float32)
    s12 = (x1 + x2) * 0.5
    d12 = (x1 - x2) * 0.5
    s34 = (x3 + x4) * 0.5
    d34 = (x3 - x4) * 0.5
    o_ref[0] = (d12 - d34).astype(o_ref.dtype)   # (row even, col even)
    o_ref[1] = (s12 - s34).astype(o_ref.dtype)   # (row even, col odd)
    o_ref[2] = (d12 + d34).astype(o_ref.dtype)   # (row odd,  col even)
    o_ref[3] = (s12 + s34).astype(o_ref.dtype)   # (row odd,  col odd)


def _iwt_twopass(xf, b, c, hh, ww, tr, out_dtype):
    rows = b * c * hh
    grid = (pl.cdiv(rows, tr),)
    bands = pl.pallas_call(
        _iwt_band_kernel,
        out_shape=jax.ShapeDtypeStruct((4, rows, ww), out_dtype),
        grid_spec=pltpu.PrefetchScalarGridSpec(
            num_scalar_prefetch=0,
            grid=grid,
            in_specs=[pl.BlockSpec((4, tr, ww), lambda r: (0, r, 0))],
            out_specs=pl.BlockSpec((4, tr, ww), lambda r: (0, r, 0)),
        ),
        compiler_params=pltpu.CompilerParams(dimension_semantics=("parallel",)),
    )(xf)
    # TODO(synk): this extra HBM pass disappears whenever the fused path is usable.
    arr = bands.reshape(2, 2, b, c, hh, ww)           # (rp, cp, B, C, H, W)
    h6 = jnp.transpose(arr, (2, 3, 4, 0, 5, 1))       # (B, C, H, rp, W, cp)
    return h6.reshape(b, c, 2 * hh, 2 * ww)


# ---------------------------------------------------------------------------
# One-time capability probe: run the fused kernel on a tiny input and compare
# with the reference; fall back to the two-pass path if it fails to compile or
# the lane shuffle misbehaves on this toolchain / shape.
# ---------------------------------------------------------------------------
_FUSED_PROBE_CACHE = {}


def _fused_supported(ww, in_dtype, out_dtype):
    key = (int(ww), jnp.dtype(in_dtype).name, jnp.dtype(out_dtype).name)
    hit = _FUSED_PROBE_CACHE.get(key)
    if hit is not None:
        return hit
    ok = False
    try:
        pb, pc, ph = 1, 1, 8
        px = jax.random.normal(jax.random.PRNGKey(123), (4 * pb, pc, ph, ww),
                               jnp.float32).astype(in_dtype)
        rows = pb * pc * ph
        got = _iwt_fused(px.reshape(4, rows, ww), pb, pc, ph, ww, rows, out_dtype)
        got = jax.block_until_ready(got)
        want = iwt_ref(px)
        ok = bool(jnp.allclose(got.astype(jnp.float32), want,
                               atol=2e-5, rtol=2e-5))
    except Exception:
        ok = False
    _FUSED_PROBE_CACHE[key] = ok
    return ok


# ---------------------------------------------------------------------------
# Public entry point: x (4*B, C, H, W) -> (B, C, 2H, 2W).
# ---------------------------------------------------------------------------
def iwt(x, *, out_dtype=jnp.float32, vmem_budget_bytes=None):
    fb, c, hh, ww = x.shape
    assert fb % 4 == 0, "input batch must be a multiple of 4"
    b = fb // 4
    rows = b * c * hh

    budget = vmem_budget_bytes or _default_vmem_budget()
    tr = _choose_tr(rows, ww, x.dtype, out_dtype, budget)

    xf = x.reshape(4, rows, ww)   # free reshape: sub-band x flattened row x W
    if _fused_supported(ww, x.dtype, out_dtype):
        return _iwt_fused(xf, b, c, hh, ww, tr, out_dtype)
    return _iwt_twopass(xf, b, c, hh, ww, tr, out_dtype)


if __name__ == "__main__":
    root = jax.random.PRNGKey(0)
    k0, k1, k2 = jax.random.split(root, 3)

    # 4*B = 8 input batch -> output batch 2; C=4, H=W=16 -> output 32x32.
    x = jax.random.normal(k0, (8, 4, 16, 16), dtype=jnp.float32)
    y = jax.block_until_ready(iwt(x))
    y_ref = iwt_ref(x)
    assert y.shape == (2, 4, 32, 32), y.shape
    assert y.dtype == jnp.float32
    assert jnp.allclose(y, y_ref, atol=1e-5, rtol=1e-5), \
        float(jnp.max(jnp.abs(y - y_ref)))

    # Multi-block grid with a partial tail block (rows % tr != 0).
    x2 = jax.random.normal(k1, (4, 3, 24, 16), dtype=jnp.float32)
    y2 = jax.block_until_ready(iwt(x2))
    assert jnp.allclose(y2, iwt_ref(x2), atol=1e-5, rtol=1e-5)

    # Width that is not a power of two / multiple of 128 (chunks 16 + 8).
    x3 = jax.random.normal(k2, (8, 2, 8, 24), dtype=jnp.float32)
    y3 = jax.block_until_ready(iwt(x3))
    assert jnp.allclose(y3, iwt_ref(x3), atol=1e-5, rtol=1e-5)

    print("KERNEL_OK")
</pallas_src>

<mosaic_0001>
module attributes {stable_mosaic.version = 11 : i64} {
  func.func @_iwt_fused_kernel(%arg0: i32, %arg1: memref<4x8x16xf32, #tpu.memory_space<vmem>>, %arg2: memref<8x64xf32, #tpu.memory_space<vmem>>) attributes {dimension_semantics = [#tpu.dimension_semantics<parallel>], iteration_bounds = array<i64: 1>, scalar_prefetch = 0 : i64, scratch_operands = 0 : i64, tpu.core_type = #tpu.core_type<tc>, window_params = [{transform_indices = @transform_0, window_bounds = array<i64: 4, 8, 16>}, {transform_indices = @transform_1, window_bounds = array<i64: 8, 64>}]} {
    %c0 = arith.constant 0 : index
    %c0_0 = arith.constant 0 : index
    %c0_1 = arith.constant 0 : index
    %0 = vector.load %arg1[%c0, %c0_0, %c0_1] : memref<4x8x16xf32, #tpu.memory_space<vmem>>, vector<1x8x16xf32>
    %1 = vector.shape_cast %0 : vector<1x8x16xf32> to vector<8x16xf32>
    %c1 = arith.constant 1 : index
    %c0_2 = arith.constant 0 : index
    %c0_3 = arith.constant 0 : index
    %2 = vector.load %arg1[%c1, %c0_2, %c0_3] : memref<4x8x16xf32, #tpu.memory_space<vmem>>, vector<1x8x16xf32>
    %3 = vector.shape_cast %2 : vector<1x8x16xf32> to vector<8x16xf32>
    %c2 = arith.constant 2 : index
    %c0_4 = arith.constant 0 : index
    %c0_5 = arith.constant 0 : index
    %4 = vector.load %arg1[%c2, %c0_4, %c0_5] : memref<4x8x16xf32, #tpu.memory_space<vmem>>, vector<1x8x16xf32>
    %5 = vector.shape_cast %4 : vector<1x8x16xf32> to vector<8x16xf32>
    %c3 = arith.constant 3 : index
    %c0_6 = arith.constant 0 : index
    %c0_7 = arith.constant 0 : index
    %6 = vector.load %arg1[%c3, %c0_6, %c0_7] : memref<4x8x16xf32, #tpu.memory_space<vmem>>, vector<1x8x16xf32>
    %7 = vector.shape_cast %6 : vector<1x8x16xf32> to vector<8x16xf32>
    %8 = arith.addf %1, %3 : vector<8x16xf32>
    %cst = arith.constant 5.000000e-01 : f32
    %9 = vector.broadcast %cst : f32 to vector<8x16xf32>
    %10 = arith.mulf %8, %9 : vector<8x16xf32>
    %11 = arith.subf %1, %3 : vector<8x16xf32>
    %cst_8 = arith.constant 5.000000e-01 : f32
    %12 = vector.broadcast %cst_8 : f32 to vector<8x16xf32>
    %13 = arith.mulf %11, %12 : vector<8x16xf32>
    %14 = arith.addf %5, %7 : vector<8x16xf32>
    %cst_9 = arith.constant 5.000000e-01 : f32
    %15 = vector.broadcast %cst_9 : f32 to vector<8x16xf32>
    %16 = arith.mulf %14, %15 : vector<8x16xf32>
    %17 = arith.subf %5, %7 : vector<8x16xf32>
    %cst_10 = arith.constant 5.000000e-01 : f32
    %18 = vector.broadcast %cst_10 : f32 to vector<8x16xf32>
    %19 = arith.mulf %17, %18 : vector<8x16xf32>
    %20 = arith.subf %13, %19 : vector<8x16xf32>
    %21 = arith.subf %10, %16 : vector<8x16xf32>
    %22 = tpu.concatenate %20, %21 in 1 : vector<8x16xf32>, vector<8x16xf32> -> vector<8x32xf32>
    %23 = tpu.iota {dimensions = array<i32: 1>} : vector<1x32xi32>
    %c32_i32 = arith.constant 32 : i32
    %c0_i32 = arith.constant 0 : i32
    %24 = arith.cmpi eq, %c32_i32, %c0_i32 : i32
    %c1_i32 = arith.constant 1 : i32
    %25 = arith.select %24, %c1_i32, %c32_i32 : i32
    %26 = vector.broadcast %25 : i32 to vector<1x32xi32>
    %27 = arith.remsi %23, %26 : vector<1x32xi32>
    %c0_i32_11 = arith.constant 0 : i32
    %28 = vector.broadcast %c0_i32_11 : i32 to vector<1x32xi32>
    %29 = arith.cmpi ne, %27, %28 : vector<1x32xi32>
    %c0_i32_12 = arith.constant 0 : i32
    %30 = vector.broadcast %c0_i32_12 : i32 to vector<1x32xi32>
    %31 = arith.cmpi slt, %27, %30 : vector<1x32xi32>
    %c0_i32_13 = arith.constant 0 : i32
    %32 = arith.cmpi slt, %25, %c0_i32_13 : i32
    %33 = vector.broadcast %32 : i1 to vector<1x32xi1>
    %34 = vector.broadcast %33 : vector<1x32xi1> to vector<1x32xi1>
    %35 = arith.xori %31, %34 : vector<1x32xi1>
    %36 = arith.andi %35, %29 : vector<1x32xi1>
    %37 = vector.broadcast %25 : i32 to vector<1x32xi32>
    %38 = arith.addi %27, %37 : vector<1x32xi32>
    %39 = arith.select %36, %38, %27 : vector<1x32xi1>, vector<1x32xi32>
    %c8_i32 = arith.constant 8 : i32
    %40 = vector.broadcast %c8_i32 : i32 to vector<1x32xi32>
    %41 = arith.cmpi sge, %39, %40 : vector<1x32xi32>
    %c16_i32 = arith.constant 16 : i32
    %42 = vector.broadcast %c16_i32 : i32 to vector<1x32xi32>
    %43 = arith.cmpi slt, %39, %42 : vector<1x32xi32>
    %44 = arith.andi %41, %43 : vector<1x32xi1>
    %c16_i32_14 = arith.constant 16 : i32
    %45 = vector.broadcast %c16_i32_14 : i32 to vector<1x32xi32>
    %46 = arith.cmpi sge, %39, %45 : vector<1x32xi32>
    %c24_i32 = arith.constant 24 : i32
    %47 = vector.broadcast %c24_i32 : i32 to vector<1x32xi32>
    %48 = arith.cmpi slt, %39, %47 : vector<1x32xi32>
    %49 = arith.andi %46, %48 : vector<1x32xi1>
    %c24_i32_15 = arith.constant 24 : i32
    %50 = tpu.dynamic_rotate %22 by %c24_i32_15 dim 1 : vector<8x32xf32>, i32 -> vector<8x32xf32>
    %c8_i32_16 = arith.constant 8 : i32
    %51 = tpu.dynamic_rotate %22 by %c8_i32_16 dim 1 : vector<8x32xf32>, i32 -> vector<8x32xf32>
    %52 = vector.shape_cast %49 : vector<1x32xi1> to vector<1x32xi1>
    %53 = vector.broadcast %52 : vector<1x32xi1> to vector<8x32xi1>
    %54 = arith.select %53, %51, %22 : vector<8x32xi1>, vector<8x32xf32>
    %55 = vector.shape_cast %44 : vector<1x32xi1> to vector<1x32xi1>
    %56 = vector.broadcast %55 : vector<1x32xi1> to vector<8x32xi1>
    %57 = arith.select %56, %50, %54 : vector<8x32xi1>, vector<8x32xf32>
    %c16_i32_17 = arith.constant 16 : i32
    %c0_i32_18 = arith.constant 0 : i32
    %58 = arith.cmpi eq, %c16_i32_17, %c0_i32_18 : i32
    %c1_i32_19 = arith.constant 1 : i32
    %59 = arith.select %58, %c1_i32_19, %c16_i32_17 : i32
    %60 = vector.broadcast %59 : i32 to vector<1x32xi32>
    %61 = arith.remsi %23, %60 : vector<1x32xi32>
    %c0_i32_20 = arith.constant 0 : i32
    %62 = vector.broadcast %c0_i32_20 : i32 to vector<1x32xi32>
    %63 = arith.cmpi ne, %61, %62 : vector<1x32xi32>
    %c0_i32_21 = arith.constant 0 : i32
    %64 = vector.broadcast %c0_i32_21 : i32 to vector<1x32xi32>
    %65 = arith.cmpi slt, %61, %64 : vector<1x32xi32>
    %c0_i32_22 = arith.constant 0 : i32
    %66 = arith.cmpi slt, %59, %c0_i32_22 : i32
    %67 = vector.broadcast %66 : i1 to vector<1x32xi1>
    %68 = vector.broadcast %67 : vector<1x32xi1> to vector<1x32xi1>
    %69 = arith.xori %65, %68 : vector<1x32xi1>
    %70 = arith.andi %69, %63 : vector<1x32xi1>
    %71 = vector.broadcast %59 : i32 to vector<1x32xi32>
    %72 = arith.addi %61, %71 : vector<1x32xi32>
    %73 = arith.select %70, %72, %61 : vector<1x32xi1>, vector<1x32xi32>
    %c4_i32 = arith.constant 4 : i32
    %74 = vector.broadcast %c4_i32 : i32 to vector<1x32xi32>
    %75 = arith.cmpi sge, %73, %74 : vector<1x32xi32>
    %c8_i32_23 = arith.constant 8 : i32
    %76 = vector.broadcast %c8_i32_23 : i32 to vector<1x32xi32>
    %77 = arith.cmpi slt, %73, %76 : vector<1x32xi32>
    %78 = arith.andi %75, %77 : vector<1x32xi1>
    %c8_i32_24 = arith.constant 8 : i32
    %79 = vector.broadcast %c8_i32_24 : i32 to vector<1x32xi32>
    %80 = arith.cmpi sge, %73, %79 : vector<1x32xi32>
    %c12_i32 = arith.constant 12 : i32
    %81 = vector.broadcast %c12_i32 : i32 to vector<1x32xi32>
    %82 = arith.cmpi slt, %73, %81 : vector<1x32xi32>
    %83 = arith.andi %80, %82 : vector<1x32xi1>
    %c28_i32 = arith.constant 28 : i32
    %84 = tpu.dynamic_rotate %57 by %c28_i32 dim 1 : vector<8x32xf32>, i32 -> vector<8x32xf32>
    %c4_i32_25 = arith.constant 4 : i32
    %85 = tpu.dynamic_rotate %57 by %c4_i32_25 dim 1 : vector<8x32xf32>, i32 -> vector<8x32xf32>
    %86 = vector.shape_cast %83 : vector<1x32xi1> to vector<1x32xi1>
    %87 = vector.broadcast %86 : vector<1x32xi1> to vector<8x32xi1>
    %88 = arith.select %87, %85, %57 : vector<8x32xi1>, vector<8x32xf32>
    %89 = vector.shape_cast %78 : vector<1x32xi1> to vector<1x32xi1>
    %90 = vector.broadcast %89 : vector<1x32xi1> to vector<8x32xi1>
    %91 = arith.select %90, %84, %88 : vector<8x32xi1>, vector<8x32xf32>
    %c8_i32_26 = arith.constant 8 : i32
    %c0_i32_27 = arith.constant 0 : i32
    %92 = arith.cmpi eq, %c8_i32_26, %c0_i32_27 : i32
    %c1_i32_28 = arith.constant 1 : i32
    %93 = arith.select %92, %c1_i32_28, %c8_i32_26 : i32
    %94 = vector.broadcast %93 : i32 to vector<1x32xi32>
    %95 = arith.remsi %23, %94 : vector<1x32xi32>
    %c0_i32_29 = arith.constant 0 : i32
    %96 = vector.broadcast %c0_i32_29 : i32 to vector<1x32xi32>
    %97 = arith.cmpi ne, %95, %96 : vector<1x32xi32>
    %c0_i32_30 = arith.constant 0 : i32
    %98 = vector.broadcast %c0_i32_30 : i32 to vector<1x32xi32>
    %99 = arith.cmpi slt, %95, %98 : vector<1x32xi32>
    %c0_i32_31 = arith.constant 0 : i32
    %100 = arith.cmpi slt, %93, %c0_i32_31 : i32
    %101 = vector.broadcast %100 : i1 to vector<1x32xi1>
    %102 = vector.broadcast %101 : vector<1x32xi1> to vector<1x32xi1>
    %103 = arith.xori %99, %102 : vector<1x32xi1>
    %104 = arith.andi %103, %97 : vector<1x32xi1>
    %105 = vector.broadcast %93 : i32 to vector<1x32xi32>
    %106 = arith.addi %95, %105 : vector<1x32xi32>
    %107 = arith.select %104, %106, %95 : vector<1x32xi1>, vector<1x32xi32>
    %c2_i32 = arith.constant 2 : i32
    %108 = vector.broadcast %c2_i32 : i32 to vector<1x32xi32>
    %109 = arith.cmpi sge, %107, %108 : vector<1x32xi32>
    %c4_i32_32 = arith.constant 4 : i32
    %110 = vector.broadcast %c4_i32_32 : i32 to vector<1x32xi32>
    %111 = arith.cmpi slt, %107, %110 : vector<1x32xi32>
    %112 = arith.andi %109, %111 : vector<1x32xi1>
    %c4_i32_33 = arith.constant 4 : i32
    %113 = vector.broadcast %c4_i32_33 : i32 to vector<1x32xi32>
    %114 = arith.cmpi sge, %107, %113 : vector<1x32xi32>
    %c6_i32 = arith.constant 6 : i32
    %115 = vector.broadcast %c6_i32 : i32 to vector<1x32xi32>
    %116 = arith.cmpi slt, %107, %115 : vector<1x32xi32>
    %117 = arith.andi %114, %116 : vector<1x32xi1>
    %c30_i32 = arith.constant 30 : i32
    %118 = tpu.dynamic_rotate %91 by %c30_i32 dim 1 : vector<8x32xf32>, i32 -> vector<8x32xf32>
    %c2_i32_34 = arith.constant 2 : i32
    %119 = tpu.dynamic_rotate %91 by %c2_i32_34 dim 1 : vector<8x32xf32>, i32 -> vector<8x32xf32>
    %120 = vector.shape_cast %117 : vector<1x32xi1> to vector<1x32xi1>
    %121 = vector.broadcast %120 : vector<1x32xi1> to vector<8x32xi1>
    %122 = arith.select %121, %119, %91 : vector<8x32xi1>, vector<8x32xf32>
    %123 = vector.shape_cast %112 : vector<1x32xi1> to vector<1x32xi1>
    %124 = vector.broadcast %123 : vector<1x32xi1> to vector<8x32xi1>
    %125 = arith.select %124, %118, %122 : vector<8x32xi1>, vector<8x32xf32>
    %c4_i32_35 = arith.constant 4 : i32
    %c0_i32_36 = arith.constant 0 : i32
    %126 = arith.cmpi eq, %c4_i32_35, %c0_i32_36 : i32
    %c1_i32_37 = arith.constant 1 : i32
    %127 = arith.select %126, %c1_i32_37, %c4_i32_35 : i32
    %128 = vector.broadcast %127 : i32 to vector<1x32xi32>
    %129 = arith.remsi %23, %128 : vector<1x32xi32>
    %c0_i32_38 = arith.constant 0 : i32
    %130 = vector.broadcast %c0_i32_38 : i32 to vector<1x32xi32>
    %131 = arith.cmpi ne, %129, %130 : vector<1x32xi32>
    %c0_i32_39 = arith.constant 0 : i32
    %132 = vector.broadcast %c0_i32_39 : i32 to vector<1x32xi32>
    %133 = arith.cmpi slt, %129, %132 : vector<1x32xi32>
    %c0_i32_40 = arith.constant 0 : i32
    %134 = arith.cmpi slt, %127, %c0_i32_40 : i32
    %135 = vector.broadcast %134 : i1 to vector<1x32xi1>
    %136 = vector.broadcast %135 : vector<1x32xi1> to vector<1x32xi1>
    %137 = arith.xori %133, %136 : vector<1x32xi1>
    %138 = arith.andi %137, %131 : vector<1x32xi1>
    %139 = vector.broadcast %127 : i32 to vector<1x32xi32>
    %140 = arith.addi %129, %139 : vector<1x32xi32>
    %141 = arith.select %138, %140, %129 : vector<1x32xi1>, vector<1x32xi32>
    %c1_i32_41 = arith.constant 1 : i32
    %142 = vector.broadcast %c1_i32_41 : i32 to vector<1x32xi32>
    %143 = arith.cmpi sge, %141, %142 : vector<1x32xi32>
    %c2_i32_42 = arith.constant 2 : i32
    %144 = vector.broadcast %c2_i32_42 : i32 to vector<1x32xi32>
    %145 = arith.cmpi slt, %141, %144 : vector<1x32xi32>
    %146 = arith.andi %143, %145 : vector<1x32xi1>
    %c2_i32_43 = arith.constant 2 : i32
    %147 = vector.broadcast %c2_i32_43 : i32 to vector<1x32xi32>
    %148 = arith.cmpi sge, %141, %147 : vector<1x32xi32>
    %c3_i32 = arith.constant 3 : i32
    %149 = vector.broadcast %c3_i32 : i32 to vector<1x32xi32>
    %150 = arith.cmpi slt, %141, %149 : vector<1x32xi32>
    %151 = arith.andi %148, %150 : vector<1x32xi1>
    %c31_i32 = arith.constant 31 : i32
    %152 = tpu.dynamic_rotate %125 by %c31_i32 dim 1 : vector<8x32xf32>, i32 -> vector<8x32xf32>
    %c1_i32_44 = arith.constant 1 : i32
    %153 = tpu.dynamic_rotate %125 by %c1_i32_44 dim 1 : vector<8x32xf32>, i32 -> vector<8x32xf32>
    %154 = vector.shape_cast %151 : vector<1x32xi1> to vector<1x32xi1>
    %155 = vector.broadcast %154 : vector<1x32xi1> to vector<8x32xi1>
    %156 = arith.select %155, %153, %125 : vector<8x32xi1>, vector<8x32xf32>
    %157 = vector.shape_cast %146 : vector<1x32xi1> to vector<1x32xi1>
    %158 = vector.broadcast %157 : vector<1x32xi1> to vector<8x32xi1>
    %159 = arith.select %158, %152, %156 : vector<8x32xi1>, vector<8x32xf32>
    %160 = arith.addf %13, %19 : vector<8x16xf32>
    %161 = arith.addf %10, %16 : vector<8x16xf32>
    %162 = tpu.concatenate %160, %161 in 1 : vector<8x16xf32>, vector<8x16xf32> -> vector<8x32xf32>
    %163 = tpu.iota {dimensions = array<i32: 1>} : vector<1x32xi32>
    %c32_i32_45 = arith.constant 32 : i32
    %c0_i32_46 = arith.constant 0 : i32
    %164 = arith.cmpi eq, %c32_i32_45, %c0_i32_46 : i32
    %c1_i32_47 = arith.constant 1 : i32
    %165 = arith.select %164, %c1_i32_47, %c32_i32_45 : i32
    %166 = vector.broadcast %165 : i32 to vector<1x32xi32>
    %167 = arith.remsi %163, %166 : vector<1x32xi32>
    %c0_i32_48 = arith.constant 0 : i32
    %168 = vector.broadcast %c0_i32_48 : i32 to vector<1x32xi32>
    %169 = arith.cmpi ne, %167, %168 : vector<1x32xi32>
    %c0_i32_49 = arith.constant 0 : i32
    %170 = vector.broadcast %c0_i32_49 : i32 to vector<1x32xi32>
    %171 = arith.cmpi slt, %167, %170 : vector<1x32xi32>
    %c0_i32_50 = arith.constant 0 : i32
    %172 = arith.cmpi slt, %165, %c0_i32_50 : i32
    %173 = vector.broadcast %172 : i1 to vector<1x32xi1>
    %174 = vector.broadcast %173 : vector<1x32xi1> to vector<1x32xi1>
    %175 = arith.xori %171, %174 : vector<1x32xi1>
    %176 = arith.andi %175, %169 : vector<1x32xi1>
    %177 = vector.broadcast %165 : i32 to vector<1x32xi32>
    %178 = arith.addi %167, %177 : vector<1x32xi32>
    %179 = arith.select %176, %178, %167 : vector<1x32xi1>, vector<1x32xi32>
    %c8_i32_51 = arith.constant 8 : i32
    %180 = vector.broadcast %c8_i32_51 : i32 to vector<1x32xi32>
    %181 = arith.cmpi sge, %179, %180 : vector<1x32xi32>
    %c16_i32_52 = arith.constant 16 : i32
    %182 = vector.broadcast %c16_i32_52 : i32 to vector<1x32xi32>
    %183 = arith.cmpi slt, %179, %182 : vector<1x32xi32>
    %184 = arith.andi %181, %183 : vector<1x32xi1>
    %c16_i32_53 = arith.constant 16 : i32
    %185 = vector.broadcast %c16_i32_53 : i32 to vector<1x32xi32>
    %186 = arith.cmpi sge, %179, %185 : vector<1x32xi32>
    %c24_i32_54 = arith.constant 24 : i32
    %187 = vector.broadcast %c24_i32_54 : i32 to vector<1x32xi32>
    %188 = arith.cmpi slt, %179, %187 : vector<1x32xi32>
    %189 = arith.andi %186, %188 : vector<1x32xi1>
    %c24_i32_55 = arith.constant 24 : i32
    %190 = tpu.dynamic_rotate %162 by %c24_i32_55 dim 1 : vector<8x32xf32>, i32 -> vector<8x32xf32>
    %c8_i32_56 = arith.constant 8 : i32
    %191 = tpu.dynamic_rotate %162 by %c8_i32_56 dim 1 : vector<8x32xf32>, i32 -> vector<8x32xf32>
    %192 = vector.shape_cast %189 : vector<1x32xi1> to vector<1x32xi1>
    %193 = vector.broadcast %192 : vector<1x32xi1> to vector<8x32xi1>
    %194 = arith.select %193, %191, %162 : vector<8x32xi1>, vector<8x32xf32>
    %195 = vector.shape_cast %184 : vector<1x32xi1> to vector<1x32xi1>
    %196 = vector.broadcast %195 : vector<1x32xi1> to vector<8x32xi1>
    %197 = arith.select %196, %190, %194 : vector<8x32xi1>, vector<8x32xf32>
    %c16_i32_57 = arith.constant 16 : i32
    %c0_i32_58 = arith.constant 0 : i32
    %198 = arith.cmpi eq, %c16_i32_57, %c0_i32_58 : i32
    %c1_i32_59 = arith.constant 1 : i32
    %199 = arith.select %198, %c1_i32_59, %c16_i32_57 : i32
    %200 = vector.broadcast %199 : i32 to vector<1x32xi32>
    %201 = arith.remsi %163, %200 : vector<1x32xi32>
    %c0_i32_60 = arith.constant 0 : i32
    %202 = vector.broadcast %c0_i32_60 : i32 to vector<1x32xi32>
    %203 = arith.cmpi ne, %201, %202 : vector<1x32xi32>
    %c0_i32_61 = arith.constant 0 : i32
    %204 = vector.broadcast %c0_i32_61 : i32 to vector<1x32xi32>
    %205 = arith.cmpi slt, %201, %204 : vector<1x32xi32>
    %c0_i32_62 = arith.constant 0 : i32
    %206 = arith.cmpi slt, %199, %c0_i32_62 : i32
    %207 = vector.broadcast %206 : i1 to vector<1x32xi1>
    %208 = vector.broadcast %207 : vector<1x32xi1> to vector<1x32xi1>
    %209 = arith.xori %205, %208 : vector<1x32xi1>
    %210 = arith.andi %209, %203 : vector<1x32xi1>
    %211 = vector.broadcast %199 : i32 to vector<1x32xi32>
    %212 = arith.addi %201, %211 : vector<1x32xi32>
    %213 = arith.select %210, %212, %201 : vector<1x32xi1>, vector<1x32xi32>
    %c4_i32_63 = arith.constant 4 : i32
    %214 = vector.broadcast %c4_i32_63 : i32 to vector<1x32xi32>
    %215 = arith.cmpi sge, %213, %214 : vector<1x32xi32>
    %c8_i32_64 = arith.constant 8 : i32
    %216 = vector.broadcast %c8_i32_64 : i32 to vector<1x32xi32>
    %217 = arith.cmpi slt, %213, %216 : vector<1x32xi32>
    %218 = arith.andi %215, %217 : vector<1x32xi1>
    %c8_i32_65 = arith.constant 8 : i32
    %219 = vector.broadcast %c8_i32_65 : i32 to vector<1x32xi32>
    %220 = arith.cmpi sge, %213, %219 : vector<1x32xi32>
    %c12_i32_66 = arith.constant 12 : i32
    %221 = vector.broadcast %c12_i32_66 : i32 to vector<1x32xi32>
    %222 = arith.cmpi slt, %213, %221 : vector<1x32xi32>
    %223 = arith.andi %220, %222 : vector<1x32xi1>
    %c28_i32_67 = arith.constant 28 : i32
    %224 = tpu.dynamic_rotate %197 by %c28_i32_67 dim 1 : vector<8x32xf32>, i32 -> vector<8x32xf32>
    %c4_i32_68 = arith.constant 4 : i32
    %225 = tpu.dynamic_rotate %197 by %c4_i32_68 dim 1 : vector<8x32xf32>, i32 -> vector<8x32xf32>
    %226 = vector.shape_cast %223 : vector<1x32xi1> to vector<1x32xi1>
    %227 = vector.broadcast %226 : vector<1x32xi1> to vector<8x32xi1>
    %228 = arith.select %227, %225, %197 : vector<8x32xi1>, vector<8x32xf32>
    %229 = vector.shape_cast %218 : vector<1x32xi1> to vector<1x32xi1>
    %230 = vector.broadcast %229 : vector<1x32xi1> to vector<8x32xi1>
    %231 = arith.select %230, %224, %228 : vector<8x32xi1>, vector<8x32xf32>
    %c8_i32_69 = arith.constant 8 : i32
    %c0_i32_70 = arith.constant 0 : i32
    %232 = arith.cmpi eq, %c8_i32_69, %c0_i32_70 : i32
    %c1_i32_71 = arith.constant 1 : i32
    %233 = arith.select %232, %c1_i32_71, %c8_i32_69 : i32
    %234 = vector.broadcast %233 : i32 to vector<1x32xi32>
    %235 = arith.remsi %163, %234 : vector<1x32xi32>
    %c0_i32_72 = arith.constant 0 : i32
    %236 = vector.broadcast %c0_i32_72 : i32 to vector<1x32xi32>
    %237 = arith.cmpi ne, %235, %236 : vector<1x32xi32>
    %c0_i32_73 = arith.constant 0 : i32
    %238 = vector.broadcast %c0_i32_73 : i32 to vector<1x32xi32>
    %239 = arith.cmpi slt, %235, %238 : vector<1x32xi32>
    %c0_i32_74 = arith.constant 0 : i32
    %240 = arith.cmpi slt, %233, %c0_i32_74 : i32
    %241 = vector.broadcast %240 : i1 to vector<1x32xi1>
    %242 = vector.broadcast %241 : vector<1x32xi1> to vector<1x32xi1>
    %243 = arith.xori %239, %242 : vector<1x32xi1>
    %244 = arith.andi %243, %237 : vector<1x32xi1>
    %245 = vector.broadcast %233 : i32 to vector<1x32xi32>
    %246 = arith.addi %235, %245 : vector<1x32xi32>
    %247 = arith.select %244, %246, %235 : vector<1x32xi1>, vector<1x32xi32>
    %c2_i32_75 = arith.constant 2 : i32
    %248 = vector.broadcast %c2_i32_75 : i32 to vector<1x32xi32>
    %249 = arith.cmpi sge, %247, %248 : vector<1x32xi32>
    %c4_i32_76 = arith.constant 4 : i32
    %250 = vector.broadcast %c4_i32_76 : i32 to vector<1x32xi32>
    %251 = arith.cmpi slt, %247, %250 : vector<1x32xi32>
    %252 = arith.andi %249, %251 : vector<1x32xi1>
    %c4_i32_77 = arith.constant 4 : i32
    %253 = vector.broadcast %c4_i32_77 : i32 to vector<1x32xi32>
    %254 = arith.cmpi sge, %247, %253 : vector<1x32xi32>
    %c6_i32_78 = arith.constant 6 : i32
    %255 = vector.broadcast %c6_i32_78 : i32 to vector<1x32xi32>
    %256 = arith.cmpi slt, %247, %255 : vector<1x32xi32>
    %257 = arith.andi %254, %256 : vector<1x32xi1>
    %c30_i32_79 = arith.constant 30 : i32
    %258 = tpu.dynamic_rotate %231 by %c30_i32_79 dim 1 : vector<8x32xf32>, i32 -> vector<8x32xf32>
    %c2_i32_80 = arith.constant 2 : i32
    %259 = tpu.dynamic_rotate %231 by %c2_i32_80 dim 1 : vector<8x32xf32>, i32 -> vector<8x32xf32>
    %260 = vector.shape_cast %257 : vector<1x32xi1> to vector<1x32xi1>
    %261 = vector.broadcast %260 : vector<1x32xi1> to vector<8x32xi1>
    %262 = arith.select %261, %259, %231 : vector<8x32xi1>, vector<8x32xf32>
    %263 = vector.shape_cast %252 : vector<1x32xi1> to vector<1x32xi1>
    %264 = vector.broadcast %263 : vector<1x32xi1> to vector<8x32xi1>
    %265 = arith.select %264, %258, %262 : vector<8x32xi1>, vector<8x32xf32>
    %c4_i32_81 = arith.constant 4 : i32
    %c0_i32_82 = arith.constant 0 : i32
    %266 = arith.cmpi eq, %c4_i32_81, %c0_i32_82 : i32
    %c1_i32_83 = arith.constant 1 : i32
    %267 = arith.select %266, %c1_i32_83, %c4_i32_81 : i32
    %268 = vector.broadcast %267 : i32 to vector<1x32xi32>
    %269 = arith.remsi %163, %268 : vector<1x32xi32>
    %c0_i32_84 = arith.constant 0 : i32
    %270 = vector.broadcast %c0_i32_84 : i32 to vector<1x32xi32>
    %271 = arith.cmpi ne, %269, %270 : vector<1x32xi32>
    %c0_i32_85 = arith.constant 0 : i32
    %272 = vector.broadcast %c0_i32_85 : i32 to vector<1x32xi32>
    %273 = arith.cmpi slt, %269, %272 : vector<1x32xi32>
    %c0_i32_86 = arith.constant 0 : i32
    %274 = arith.cmpi slt, %267, %c0_i32_86 : i32
    %275 = vector.broadcast %274 : i1 to vector<1x32xi1>
    %276 = vector.broadcast %275 : vector<1x32xi1> to vector<1x32xi1>
    %277 = arith.xori %273, %276 : vector<1x32xi1>
    %278 = arith.andi %277, %271 : vector<1x32xi1>
    %279 = vector.broadcast %267 : i32 to vector<1x32xi32>
    %280 = arith.addi %269, %279 : vector<1x32xi32>
    %281 = arith.select %278, %280, %269 : vector<1x32xi1>, vector<1x32xi32>
    %c1_i32_87 = arith.constant 1 : i32
    %282 = vector.broadcast %c1_i32_87 : i32 to vector<1x32xi32>
    %283 = arith.cmpi sge, %281, %282 : vector<1x32xi32>
    %c2_i32_88 = arith.constant 2 : i32
    %284 = vector.broadcast %c2_i32_88 : i32 to vector<1x32xi32>
    %285 = arith.cmpi slt, %281, %284 : vector<1x32xi32>
    %286 = arith.andi %283, %285 : vector<1x32xi1>
    %c2_i32_89 = arith.constant 2 : i32
    %287 = vector.broadcast %c2_i32_89 : i32 to vector<1x32xi32>
    %288 = arith.cmpi sge, %281, %287 : vector<1x32xi32>
    %c3_i32_90 = arith.constant 3 : i32
    %289 = vector.broadcast %c3_i32_90 : i32 to vector<1x32xi32>
    %290 = arith.cmpi slt, %281, %289 : vector<1x32xi32>
    %291 = arith.andi %288, %290 : vector<1x32xi1>
    %c31_i32_91 = arith.constant 31 : i32
    %292 = tpu.dynamic_rotate %265 by %c31_i32_91 dim 1 : vector<8x32xf32>, i32 -> vector<8x32xf32>
    %c1_i32_92 = arith.constant 1 : i32
    %293 = tpu.dynamic_rotate %265 by %c1_i32_92 dim 1 : vector<8x32xf32>, i32 -> vector<8x32xf32>
    %294 = vector.shape_cast %291 : vector<1x32xi1> to vector<1x32xi1>
    %295 = vector.broadcast %294 : vector<1x32xi1> to vector<8x32xi1>
    %296 = arith.select %295, %293, %265 : vector<8x32xi1>, vector<8x32xf32>
    %297 = vector.shape_cast %286 : vector<1x32xi1> to vector<1x32xi1>
    %298 = vector.broadcast %297 : vector<1x32xi1> to vector<8x32xi1>
    %299 = arith.select %298, %292, %296 : vector<8x32xi1>, vector<8x32xf32>
    %c0_93 = arith.constant 0 : index
    %c0_94 = arith.constant 0 : index
    %300 = vector.load %arg2[%c0_93, %c0_94] : memref<8x64xf32, #tpu.memory_space<vmem>>, vector<8x32xf32>
    tpu.vector_store %arg2[%c0_93, %c0_94], %159 {strides = array<i32>} : memref<8x64xf32, #tpu.memory_space<vmem>>, vector<8x32xf32>,
    %c0_95 = arith.constant 0 : index
    %c32 = arith.constant 32 : index
    %301 = vector.load %arg2[%c0_95, %c32] : memref<8x64xf32, #tpu.memory_space<vmem>>, vector<8x32xf32>
    tpu.vector_store %arg2[%c0_95, %c32], %299 {strides = array<i32>} : memref<8x64xf32, #tpu.memory_space<vmem>>, vector<8x32xf32>,
    return
  }
  func.func @transform_0(%arg0: i32) -> (i32, i32, i32) {
    %c0_i32 = arith.constant 0 : i32
    %c0_i32_0 = arith.constant 0 : i32
    %c0_i32_1 = arith.constant 0 : i32
    return %c0_i32, %arg0, %c0_i32_0 : i32, i32, i32
  }
  func.func @transform_1(%arg0: i32) -> (i32, i32) {
    %c0_i32 = arith.constant 0 : i32
    %c0_i32_0 = arith.constant 0 : i32
    return %arg0, %c0_i32 : i32, i32
  }
}

module attributes {stable_mosaic.version = 11 : i64} {
  func.func @_iwt_band_kernel(%arg0: i32, %arg1: memref<4x16x16xf32, #tpu.memory_space<vmem>>, %arg2: memref<4x16x16xf32, #tpu.memory_space<vmem>>) attributes {dimension_semantics = [#tpu.dimension_semantics<parallel>], iteration_bounds = array<i64: 8>, scalar_prefetch = 0 : i64, scratch_operands = 0 : i64, tpu.core_type = #tpu.core_type<tc>, window_params = [{transform_indices = @transform_0, window_bounds = array<i64: 4, 16, 16>}, {transform_indices = @transform_1, window_bounds = array<i64: 4, 16, 16>}]} {
    %c0 = arith.constant 0 : index
    %c0_0 = arith.constant 0 : index
    %c0_1 = arith.constant 0 : index
    %0 = vector.load %arg1[%c0, %c0_0, %c0_1] : memref<4x16x16xf32, #tpu.memory_space<vmem>>, vector<1x16x16xf32>
    %1 = vector.shape_cast %0 : vector<1x16x16xf32> to vector<16x16xf32>
    %c1 = arith.constant 1 : index
    %c0_2 = arith.constant 0 : index
    %c0_3 = arith.constant 0 : index
    %2 = vector.load %arg1[%c1, %c0_2, %c0_3] : memref<4x16x16xf32, #tpu.memory_space<vmem>>, vector<1x16x16xf32>
    %3 = vector.shape_cast %2 : vector<1x16x16xf32> to vector<16x16xf32>
    %c2 = arith.constant 2 : index
    %c0_4 = arith.constant 0 : index
    %c0_5 = arith.constant 0 : index
    %4 = vector.load %arg1[%c2, %c0_4, %c0_5] : memref<4x16x16xf32, #tpu.memory_space<vmem>>, vector<1x16x16xf32>
    %5 = vector.shape_cast %4 : vector<1x16x16xf32> to vector<16x16xf32>
    %c3 = arith.constant 3 : index
    %c0_6 = arith.constant 0 : index
    %c0_7 = arith.constant 0 : index
    %6 = vector.load %arg1[%c3, %c0_6, %c0_7] : memref<4x16x16xf32, #tpu.memory_space<vmem>>, vector<1x16x16xf32>
    %7 = vector.shape_cast %6 : vector<1x16x16xf32> to vector<16x16xf32>
    %8 = arith.addf %1, %3 : vector<16x16xf32>
    %cst = arith.constant 5.000000e-01 : f32
    %9 = vector.broadcast %cst : f32 to vector<16x16xf32>
    %10 = arith.mulf %8, %9 : vector<16x16xf32>
    %11 = arith.subf %1, %3 : vector<16x16xf32>
    %cst_8 = arith.constant 5.000000e-01 : f32
    %12 = vector.broadcast %cst_8 : f32 to vector<16x16xf32>
    %13 = arith.mulf %11, %12 : vector<16x16xf32>
    %14 = arith.addf %5, %7 : vector<16x16xf32>
    %cst_9 = arith.constant 5.000000e-01 : f32
    %15 = vector.broadcast %cst_9 : f32 to vector<16x16xf32>
    %16 = arith.mulf %14, %15 : vector<16x16xf32>
    %17 = arith.subf %5, %7 : vector<16x16xf32>
    %cst_10 = arith.constant 5.000000e-01 : f32
    %18 = vector.broadcast %cst_10 : f32 to vector<16x16xf32>
    %19 = arith.mulf %17, %18 : vector<16x16xf32>
    %20 = arith.subf %13, %19 : vector<16x16xf32>
    %c0_11 = arith.constant 0 : index
    %c0_12 = arith.constant 0 : index
    %c0_13 = arith.constant 0 : index
    %21 = vector.load %arg2[%c0_11, %c0_12, %c0_13] : memref<4x16x16xf32, #tpu.memory_space<vmem>>, vector<1x16x16xf32>
    %22 = vector.shape_cast %21 : vector<1x16x16xf32> to vector<16x16xf32>
    %23 = vector.shape_cast %20 : vector<16x16xf32> to vector<1x16x16xf32>
    tpu.vector_store %arg2[%c0_11, %c0_12, %c0_13], %23 {strides = array<i32>} : memref<4x16x16xf32, #tpu.memory_space<vmem>>, vector<1x16x16xf32>,
    %24 = arith.subf %10, %16 : vector<16x16xf32>
    %c1_14 = arith.constant 1 : index
    %c0_15 = arith.constant 0 : index
    %c0_16 = arith.constant 0 : index
    %25 = vector.load %arg2[%c1_14, %c0_15, %c0_16] : memref<4x16x16xf32, #tpu.memory_space<vmem>>, vector<1x16x16xf32>
    %26 = vector.shape_cast %25 : vector<1x16x16xf32> to vector<16x16xf32>
    %27 = vector.shape_cast %24 : vector<16x16xf32> to vector<1x16x16xf32>
    tpu.vector_store %arg2[%c1_14, %c0_15, %c0_16], %27 {strides = array<i32>} : memref<4x16x16xf32, #tpu.memory_space<vmem>>, vector<1x16x16xf32>,
    %28 = arith.addf %13, %19 : vector<16x16xf32>
    %c2_17 = arith.constant 2 : index
    %c0_18 = arith.constant 0 : index
    %c0_19 = arith.constant 0 : index
    %29 = vector.load %arg2[%c2_17, %c0_18, %c0_19] : memref<4x16x16xf32, #tpu.memory_space<vmem>>, vector<1x16x16xf32>
    %30 = vector.shape_cast %29 : vector<1x16x16xf32> to vector<16x16xf32>
    %31 = vector.shape_cast %28 : vector<16x16xf32> to vector<1x16x16xf32>
    tpu.vector_store %arg2[%c2_17, %c0_18, %c0_19], %31 {strides = array<i32>} : memref<4x16x16xf32, #tpu.memory_space<vmem>>, vector<1x16x16xf32>,
    %32 = arith.addf %10, %16 : vector<16x16xf32>
    %c3_20 = arith.constant 3 : index
    %c0_21 = arith.constant 0 : index
    %c0_22 = arith.constant 0 : index
    %33 = vector.load %arg2[%c3_20, %c0_21, %c0_22] : memref<4x16x16xf32, #tpu.memory_space<vmem>>, vector<1x16x16xf32>
    %34 = vector.shape_cast %33 : vector<1x16x16xf32> to vector<16x16xf32>
    %35 = vector.shape_cast %32 : vector<16x16xf32> to vector<1x16x16xf32>
    tpu.vector_store %arg2[%c3_20, %c0_21, %c0_22], %35 {strides = array<i32>} : memref<4x16x16xf32, #tpu.memory_space<vmem>>, vector<1x16x16xf32>,
    return
  }
  func.func @transform_0(%arg0: i32) -> (i32, i32, i32) {
    %c0_i32 = arith.constant 0 : i32
    %c0_i32_0 = arith.constant 0 : i32
    %c0_i32_1 = arith.constant 0 : i32
    return %c0_i32, %arg0, %c0_i32_0 : i32, i32, i32
  }
  func.func @transform_1(%arg0: i32) -> (i32, i32, i32) {
    %c0_i32 = arith.constant 0 : i32
    %c0_i32_0 = arith.constant 0 : i32
    %c0_i32_1 = arith.constant 0 : i32
    return %c0_i32, %arg0, %c0_i32_0 : i32, i32, i32
  }
}

</mosaic_0001>

<llo_original>
// kernel: tpu_custom_call.1
$region0: #{tpu_custom_call.1}
  #allocation0 [shape = 'u32[]', space=smem, size = 0x4, offset = 0x4, fixed_abs, tag = 'smem constant byte address 0x4 - core index']
  #allocation1 [shape = 'u32[144,128]{1,0:T(1,128)}', space=vmem, size = 0x12000, scoped, tag = 'internal scratch']
  %s0 = inlined_call_operand.hbm [shape: f32[4,8,16], index: 0, kind: input, shape index: {}]
  %s1 = inlined_call_operand.hbm [shape: f32[8,64], index: 1, kind: output, shape index: {}]
  %s2 = sld [smem:[#allocation0]]
  $region18: #{tpu_custom_call.1} parent=0
    _
  %s4 = ssub.s32 1, %s2
  %s5 = scalar_select 0, %s4, %s2
  $region1: #{tpu_custom_call.1} parent=0
    #allocation2 [shape = 'u8[16384]{0}', space=vmem, size = 0x4000, scoped, tag = 'input window, operand 0, single buffered']
    #allocation3 [shape = 's32[1]{0}', space=sflag, size = 0x4, scoped, tag = 'scoped memory for tpu_custom_call.1']
    #allocation4 [shape = 's32[1]{0}', space=sflag, size = 0x4, scoped, tag = 'scoped memory for tpu_custom_call.1']
    #allocation5 [shape = 'u8[4096]{0}', space=vmem, size = 0x1000, scoped, tag = 'output window, operand 0, single buffered']
    %6 = vsyncpa [#allocation3], 0
    %7 = vsyncpa [#allocation4], 0
    // Predicated region
    $region2: #{tpu_custom_call.1} parent=1 // pred_check
      _
    $region3: #{tpu_custom_call.1} parent=1 // pred_check_branch
      %9 = sbr.rel (0) target = $region5
    $region4: #{tpu_custom_call.1} parent=1 // pred_region
      %s11 = ssub.s32 512, 512
      %12 = vsyncadd [#allocation3], %s11
      %s13 = sshll.u32 [#allocation2], 4
      %s14 = int_to_ptr.vmem [resolvable:$true] %s13
      %19 = dma.hbm_to_vmem [thread:$0]  %s0, 512, %s14, [#allocation3], 128, 128, 8
    $region5: #{tpu_custom_call.1} parent=1 // pred_fallthru
      _
    // Predicated region
    $region6: #{tpu_custom_call.1} parent=1 // pred_check
      _
    $region7: #{tpu_custom_call.1} parent=1 // pred_check_branch
      %21 = sbr.rel (0) target = $region9
    $region8: #{tpu_custom_call.1} parent=1 // pred_region
      %22 = dma.done [#allocation3], 512
    $region9: #{tpu_custom_call.1} parent=1 // pred_fallthru
      _
    %v23 = vld [vmem:[#allocation2] sm:$0xff]
    %s24 = scalar_lea.vmem [#allocation2], 8
    %v25 = vld [vmem:[%s24] sm:$0xff]
    %s26 = scalar_lea.vmem [#allocation2], 16
    %v27 = vld [vmem:[%s26] sm:$0xff]
    %s28 = scalar_lea.vmem [#allocation2], 24
    %v29 = vld [vmem:[%s28] sm:$0xff]
    %v30 = vadd.f32 %v23, %v25
    %v31 = vmul.f32 %v30, 0.5
    %v32 = vsub.f32 %v23, %v25
    %v33 = vmul.f32 %v32, 0.5
    %v34 = vadd.f32 %v27, %v29
    %v35 = vmul.f32 %v34, 0.5
    %v36 = vsub.f32 %v27, %v29
    %v37 = vmul.f32 %v36, 0.5
    %v38 = vsub.f32 %v33, %v37
    %v39 = vsub.f32 %v31, %v35
    %41 = vrot.lane.b32.xlu0 %v39, 16
    %v42 = vpop.permute.xlu0 %41
    %vm44 = vcmask 130048
    %v45 = vsel %vm44, %v38, %v42
    %v46 = vlaneseq
    %v47 = vand.u32 %v46, 127
    %vm48 = vcmp.lt.s32.totalorder %v47, 0
    %v49 = vsub.s32 0, %v47
    %v50 = vsel %vm48, %v49, %v47
    %v51 = vshrl.u32 %v50, 5
    %v52 = vand.u32 %v50, 31
    %v53 = vsub.s32 0, %v52
    %v54 = vsel %vm48, %v53, %v52
    %vm55 = vcmp.ne.s32.totalorder %v54, 0
    %vm56 = vcmp.lt.s32.totalorder %v54, 0
    %vm57 = vmand %vm56, %vm55
    %v58 = vadd.s32 %v54, 32
    %v59 = vsel %vm57, %v58, %v54
    %vm60 = vcmp.ge.s32.totalorder %v59, 8
    %vm61 = vcmp.lt.s32.totalorder %v59, 16
    %vm62 = vmand %vm60, %vm61
    %vm63 = vcmp.ge.s32.totalorder %v59, 16
    %vm64 = vcmp.lt.s32.totalorder %v59, 24
    %vm65 = vmand %vm63, %vm64
    %vm66 = vcmask 1047808
    %67 = vrot.lane.b32.xlu0 %v45, 32
    %v68 = vpop.permute.xlu0 %67
    %v69 = vsel %vm66, %v68, %v45
    %70 = vrot.lane.b32.xlu0 %v69, 32
    %v71 = vpop.permute.xlu0 %70
    %v72 = vsel %vm66, %v71, %v45
    %v73 = vsel %vm65, 1, 0
    %vm74 = vcmp.eq.s32.totalorder %v73, 1
    %76 = vrot.lane.b32.xlu0 %v72, 104
    %v77 = vpop.permute.xlu0 %76
    %v79 = vsel %vm74, %v77, %v45
    %v80 = vsel %vm62, 1, 0
    %vm81 = vcmp.eq.s32.totalorder %v80, 1
    %82 = vrot.lane.b32.xlu0 %v72, 120
    %v83 = vpop.permute.xlu0 %82
    %v85 = vsel %vm81, %v83, %v79
    %vm86 = vcmp.lt.s32.totalorder %v47, 0
    %v87 = vsub.s32 0, %v47
    %v88 = vsel %vm86, %v87, %v47
    %v89 = vshrl.u32 %v88, 4
    %v90 = vand.u32 %v88, 15
    %v91 = vsub.s32 0, %v90
    %v92 = vsel %vm86, %v91, %v90
    %vm93 = vcmp.ne.s32.totalorder %v92, 0
    %vm94 = vcmp.lt.s32.totalorder %v92, 0
    %vm95 = vmand %vm94, %vm93
    %v96 = vadd.s32 %v92, 16
    %v97 = vsel %vm95, %v96, %v92
    %vm98 = vcmp.ge.s32.totalorder %v97, 4
    %vm99 = vcmp.lt.s32.totalorder %v97, 8
    %vm100 = vmand %vm98, %vm99
    %vm101 = vcmp.ge.s32.totalorder %v97, 8
    %vm102 = vcmp.lt.s32.totalorder %v97, 12
    %vm103 = vmand %vm101, %vm102
    %104 = vrot.lane.b32.xlu0 %v85, 32
    %v105 = vpop.permute.xlu0 %104
    %v106 = vsel %vm66, %v105, %v85
    %107 = vrot.lane.b32.xlu0 %v106, 32
    %v108 = vpop.permute.xlu0 %107
    %v109 = vsel %vm66, %v108, %v85
    %v110 = vsel %vm103, 1, 0
    %vm111 = vcmp.eq.s32.totalorder %v110, 1
    %113 = vrot.lane.b32.xlu0 %v109, 100
    %v114 = vpop.permute.xlu0 %113
    %v116 = vsel %vm111, %v114, %v85
    %v117 = vsel %vm100, 1, 0
    %vm118 = vcmp.eq.s32.totalorder %v117, 1
    %119 = vrot.lane.b32.xlu0 %v109, 124
    %v120 = vpop.permute.xlu0 %119
    %v122 = vsel %vm118, %v120, %v116
    %vm123 = vcmp.lt.s32.totalorder %v47, 0
    %v124 = vsub.s32 0, %v47
    %v125 = vsel %vm123, %v124, %v47
    %v126 = vshrl.u32 %v125, 3
    %v127 = vand.u32 %v125, 7
    %v128 = vsub.s32 0, %v127
    %v129 = vsel %vm123, %v128, %v127
    %vm130 = vcmp.ne.s32.totalorder %v129, 0
    %vm131 = vcmp.lt.s32.totalorder %v129, 0
    %vm132 = vmand %vm131, %vm130
    %v133 = vadd.s32 %v129, 8
    %v134 = vsel %vm132, %v133, %v129
    %vm135 = vcmp.ge.s32.totalorder %v134, 2
    %vm136 = vcmp.lt.s32.totalorder %v134, 4
    %vm137 = vmand %vm135, %vm136
    %vm138 = vcmp.ge.s32.totalorder %v134, 4
    %vm139 = vcmp.lt.s32.totalorder %v134, 6
    %vm140 = vmand %vm138, %vm139
    %141 = vrot.lane.b32.xlu0 %v122, 32
    %v142 = vpop.permute.xlu0 %141
    %v143 = vsel %vm66, %v142, %v122
    %144 = vrot.lane.b32.xlu0 %v143, 32
    %v145 = vpop.permute.xlu0 %144
    %v146 = vsel %vm66, %v145, %v122
    %v147 = vsel %vm140, 1, 0
    %vm148 = vcmp.eq.s32.totalorder %v147, 1
    %150 = vrot.lane.b32.xlu0 %v146, 98
    %v151 = vpop.permute.xlu0 %150
    %v153 = vsel %vm148, %v151, %v122
    %v154 = vsel %vm137, 1, 0
    %vm155 = vcmp.eq.s32.totalorder %v154, 1
    %156 = vrot.lane.b32.xlu0 %v146, 126
    %v157 = vpop.permute.xlu0 %156
    %v159 = vsel %vm155, %v157, %v153
    %vm160 = vcmp.lt.s32.totalorder %v47, 0
    %v161 = vsub.s32 0, %v47
    %v162 = vsel %vm160, %v161, %v47
    %v163 = vshrl.u32 %v162, 2
    %v164 = vand.u32 %v162, 3
    %v165 = vsub.s32 0, %v164
    %v166 = vsel %vm160, %v165, %v164
    %vm167 = vcmp.ne.s32.totalorder %v166, 0
    %vm168 = vcmp.lt.s32.totalorder %v166, 0
    %vm169 = vmand %vm168, %vm167
    %v170 = vadd.s32 %v166, 4
    %v171 = vsel %vm169, %v170, %v166
    %vm172 = vcmp.ge.s32.totalorder %v171, 1
    %vm173 = vcmp.lt.s32.totalorder %v171, 2
    %vm174 = vmand %vm172, %vm173
    %vm175 = vcmp.ge.s32.totalorder %v171, 2
    %vm176 = vcmp.lt.s32.totalorder %v171, 3
    %vm177 = vmand %vm175, %vm176
    %178 = vrot.lane.b32.xlu0 %v159, 32
    %v179 = vpop.permute.xlu0 %178
    %v180 = vsel %vm66, %v179, %v159
    %181 = vrot.lane.b32.xlu0 %v180, 32
    %v182 = vpop.permute.xlu0 %181
    %v183 = vsel %vm66, %v182, %v159
    %v184 = vsel %vm177, 1, 0
    %vm185 = vcmp.eq.s32.totalorder %v184, 1
    %187 = vrot.lane.b32.xlu0 %v183, 97
    %v188 = vpop.permute.xlu0 %187
    %v190 = vsel %vm185, %v188, %v159
    %v191 = vsel %vm174, 1, 0
    %vm192 = vcmp.eq.s32.totalorder %v191, 1
    %193 = vrot.lane.b32.xlu0 %v183, 127
    %v194 = vpop.permute.xlu0 %193
    %v196 = vsel %vm192, %v194, %v190
    %v197 = vadd.f32 %v33, %v37
    %v198 = vadd.f32 %v31, %v35
    %200 = vrot.lane.b32.xlu0 %v198, 16
    %v201 = vpop.permute.xlu0 %200
    %v203 = vsel %vm44, %v197, %v201
    %204 = vrot.lane.b32.xlu0 %v203, 32
    %v205 = vpop.permute.xlu0 %204
    %v206 = vsel %vm66, %v205, %v203
    %207 = vrot.lane.b32.xlu0 %v206, 32
    %v208 = vpop.permute.xlu0 %207
    %v209 = vsel %vm66, %v208, %v203
    %211 = vrot.lane.b32.xlu0 %v209, 104
    %v212 = vpop.permute.xlu0 %211
    %v214 = vsel %vm74, %v212, %v203
    %215 = vrot.lane.b32.xlu0 %v209, 120
    %v216 = vpop.permute.xlu0 %215
    %v218 = vsel %vm81, %v216, %v214
    %219 = vrot.lane.b32.xlu0 %v218, 32
    %v220 = vpop.permute.xlu0 %219
    %v221 = vsel %vm66, %v220, %v218
    %222 = vrot.lane.b32.xlu0 %v221, 32
    %v223 = vpop.permute.xlu0 %222
    %v224 = vsel %vm66, %v223, %v218
    %226 = vrot.lane.b32.xlu0 %v224, 100
    %v227 = vpop.permute.xlu0 %226
    %v229 = vsel %vm111, %v227, %v218
    %230 = vrot.lane.b32.xlu0 %v224, 124
    %v231 = vpop.permute.xlu0 %230
    %v233 = vsel %vm118, %v231, %v229
    %234 = vrot.lane.b32.xlu0 %v233, 32
    %v235 = vpop.permute.xlu0 %234
    %v236 = vsel %vm66, %v235, %v233
    %237 = vrot.lane.b32.xlu0 %v236, 32
    %v238 = vpop.permute.xlu0 %237
    %v239 = vsel %vm66, %v238, %v233
    %241 = vrot.lane.b32.xlu0 %v239, 98
    %v242 = vpop.permute.xlu0 %241
    %v244 = vsel %vm148, %v242, %v233
    %245 = vrot.lane.b32.xlu0 %v239, 126
    %v246 = vpop.permute.xlu0 %245
    %v248 = vsel %vm155, %v246, %v244
    %249 = vrot.lane.b32.xlu0 %v248, 32
    %v250 = vpop.permute.xlu0 %249
    %v251 = vsel %vm66, %v250, %v248
    %252 = vrot.lane.b32.xlu0 %v251, 32
    %v253 = vpop.permute.xlu0 %252
    %v254 = vsel %vm66, %v253, %v248
    %256 = vrot.lane.b32.xlu0 %v254, 97
    %v257 = vpop.permute.xlu0 %256
    %v259 = vsel %vm185, %v257, %v248
    %260 = vrot.lane.b32.xlu0 %v254, 127
    %v261 = vpop.permute.xlu0 %260
    %v263 = vsel %vm192, %v261, %v259
    %vm264 = vcmask 261120
    %265 = vst.msk [vmem:[#allocation5] sm:$0xff] %vm264, %v196
    %267 = vrot.lane.b32.xlu0 %v263, 32
    %v268 = vpop.permute.xlu0 %267
    %vm270 = vcmask 523520
    %271 = vst.msk [vmem:[#allocation5] sm:$0xff] %vm270, %v268
    // Predicated region
    $region10: #{tpu_custom_call.1} parent=1 // pred_check
      _
    $region11: #{tpu_custom_call.1} parent=1 // pred_check_branch
      %273 = sbr.rel (0) target = $region13
    $region12: #{tpu_custom_call.1} parent=1 // pred_region
      %s275 = ssub.s32 128, 128
      %276 = vsyncadd [#allocation4], %s275
      %s278 = sshll.u32 [#allocation5], 4
      %s279 = int_to_ptr.vmem [resolvable:$true] %s278
      %281 = dma.vmem_to_hbm [thread:$0]  %s279, 128, %s1, [#allocation4]
    $region13: #{tpu_custom_call.1} parent=1 // pred_fallthru
      _
    // Predicated region
    $region14: #{tpu_custom_call.1} parent=1 // pred_check
      _
    $region15: #{tpu_custom_call.1} parent=1 // pred_check_branch
      %283 = sbr.rel (0) target = $region17
    $region16: #{tpu_custom_call.1} parent=1 // pred_region
      %284 = dma.done [#allocation4], 128
    $region17: #{tpu_custom_call.1} parent=1 // pred_fallthru
      _
    %285 = vsyncpa [#allocation3], 1
    %286 = vsyncpa [#allocation4], 1

// kernel: tpu_custom_call.1
$region0: #{tpu_custom_call.1}
  #allocation0 [shape = 'u32[]', space=smem, size = 0x4, offset = 0x4, fixed_abs, tag = 'smem constant byte address 0x4 - core index']
  #allocation1 [shape = 'u32[144,128]{1,0:T(1,128)}', space=vmem, size = 0x12000, scoped, tag = 'internal scratch']
  %s0 = inlined_call_operand.vmem [shape: f32[4,128,16], index: 0, kind: input, shape index: {}]
  %s1 = inlined_call_operand.vmem [shape: f32[4,128,16], index: 1, kind: output, shape index: {}]
  %s2 = sld [smem:[#allocation0]]
  $region109: #{tpu_custom_call.1} parent=0
    _
  %s4 = ssub.s32 1, %s2
  %s5 = scalar_select 0, %s4, %s2
  $region1: #{tpu_custom_call.1} parent=0
    #allocation2 [shape = 'u8[65536]{0}', space=vmem, size = 0x10000, scoped, tag = 'input window, operand 0']
    #allocation3 [shape = 'u8[65536]{0}', space=vmem, size = 0x10000, scoped, tag = 'output window, operand 0']
    loop: start=0, step=1, limit=10
    $region2: #{tpu_custom_call.1} parent=1 // loop_pre_header
      _
    $region3: #{tpu_custom_call.1} parent=1 // loop_header
      %s7 = sphi 0, %s11
      %p8 = scmp.ge.s32.totalorder %s7, 10
      %s17 = sphi 0, %s19
      %s20 = sphi 0, %s17
      %s21 = sphi 0, %s20
      %s37 = sphi 0, %s21
      %s43 = sphi 0, %s45
      %s46 = sphi 0, %s43
      %s47 = sphi 0, %s46
      %s63 = sphi 0, %s47
    $region4: #{tpu_custom_call.1} parent=1 // loop_header_branch
      %10 = sbr.rel (%p8) target = $region8
    $region5: #{tpu_custom_call.1} parent=1 // loop_body
      %s12 = ssub.s32 %s7, 1
      %s13 = ssub.s32 %s7, 2
      %s14 = sadd.s32 %s7, 1
      %s15 = ssub.s32 %s7, %s14
      %p16 = scmp.eq.s32.totalorder %s15, 0
      %s18 = sadd.s32 %s17, 1
      %s19 = scalar_select %p16, %s17, %s18
      %p22 = pneg %p16
      %p23 = scmp.eq.s32.totalorder %s7, 7
      %p24 = por %p22, %p23
      %p25 = scmp.ne.s32.totalorder %s17, %s20
      %p26 = scmp.eq.s32.totalorder %s7, 0
      %p27 = por %p25, %p26
      %p28 = scmp.ne.s32.totalorder %s17, %s20
      %p29 = scmp.eq.s32.totalorder %s12, 7
      %p30 = por %p28, %p29
      %p31 = scmp.ne.s32.totalorder %s20, %s21
      %p32 = scmp.eq.s32.totalorder %s12, 0
      %p33 = por %p31, %p32
      %p34 = scmp.ne.s32.totalorder %s20, %s21
      %p35 = scmp.eq.s32.totalorder %s13, 7
      %p36 = por %p34, %p35
      %p38 = scmp.ne.s32.totalorder %s21, %s37
      %p39 = scmp.eq.s32.totalorder %s13, 0
      %p40 = por %p38, %p39
      %s41 = ssub.s32 %s7, %s14
      %p42 = scmp.eq.s32.totalorder %s41, 0
      %s44 = sadd.s32 %s43, 1
      %s45 = scalar_select %p42, %s43, %s44
      %p48 = pneg %p42
      %p49 = scmp.eq.s32.totalorder %s7, 7
      %p50 = por %p48, %p49
      %p51 = scmp.ne.s32.totalorder %s43, %s46
      %p52 = scmp.eq.s32.totalorder %s7, 0
      %p53 = por %p51, %p52
      %p54 = scmp.ne.s32.totalorder %s43, %s46
      %p55 = scmp.eq.s32.totalorder %s12, 7
      %p56 = por %p54, %p55
      %p57 = scmp.ne.s32.totalorder %s46, %s47
      %p58 = scmp.eq.s32.totalorder %s12, 0
      %p59 = por %p57, %p58
      %p60 = scmp.ne.s32.totalorder %s46, %s47
      %p61 = scmp.eq.s32.totalorder %s13, 7
      %p62 = por %p60, %p61
      %p64 = scmp.ne.s32.totalorder %s47, %s63
      %p65 = scmp.eq.s32.totalorder %s13, 0
      %p66 = por %p64, %p65
      %p67 = scmp.le.s32.totalorder 1, %s7
      %p68 = scmp.lt.s32.totalorder %s7, 9
      %p69 = pnand %p67, %p68
      %p70 = pneg %p69
      // Predicated region
      $region9: #{tpu_custom_call.1} parent=5 // pred_check
        _
      $region10: #{tpu_custom_call.1} parent=5 // pred_check_branch
        %72 = sbr.rel (%p69) target = $region12
      $region11: #{tpu_custom_call.1} parent=5 // pred_region
        %s73 = ssub.s32 %s7, 1
      $region12: #{tpu_custom_call.1} parent=5 // pred_fallthru
        _
      %p74 = scmp.lt.s32.totalorder %s7, 8
      // Predicated region
      $region13: #{tpu_custom_call.1} parent=5 // pred_check
        %p75 = pneg %p74
      $region14: #{tpu_custom_call.1} parent=5 // pred_check_branch
        %77 = sbr.rel (%p75) target = $region16
      $region15: #{tpu_custom_call.1} parent=5 // pred_region
        // Predicated region
        $region17: #{tpu_custom_call.1} parent=15 // pred_check
          %p78 = pneg %p27
        $region18: #{tpu_custom_call.1} parent=15 // pred_check_branch
          %80 = sbr.rel (%p78) target = $region20
        $region19: #{tpu_custom_call.1} parent=15 // pred_region
          %s81 = sand.u32 %s17, 1
          %s82 = sand.u32 %s17, 1
          %s83 = smul.addr %s82, 64
          %s84 = scalar_lea.vmem [#allocation2], %s83
          %s85 = smul.u32 2, %s7
          %s86 = smul.addr %s85, 8
          %s87 = scalar_lea.vmem %s0, %s86
          // Predicated region
          $region21: #{tpu_custom_call.1} parent=19 // pred_check
            _
          $region22: #{tpu_custom_call.1} parent=19 // pred_check_branch
            %89 = sbr.rel (0) target = $region24
          $region23: #{tpu_custom_call.1} parent=19 // pred_region
            // Predicated region
            $region25: #{tpu_custom_call.1} parent=23 // pred_check
              _
            $region26: #{tpu_custom_call.1} parent=23 // pred_check_branch
              %91 = sbr.rel (0) target = $region28
            $region27: #{tpu_custom_call.1} parent=23 // pred_region
              // Predicated region
              $region40: #{tpu_custom_call.1} parent=27 // pred_check
                _
              $region41: #{tpu_custom_call.1} parent=27 // pred_check_branch
                %120 = sbr.rel (0) target = $region43
              $region42: #{tpu_custom_call.1} parent=27 // pred_region
                loop: start=0, step=1, limit=1
                $region44: #{tpu_custom_call.1} parent=42 // loop_pre_header
                  _
                $region45: #{tpu_custom_call.1} parent=42 // loop_header
                  %s122 = sphi 0, %s126
                  %p123 = scmp.ge.s32.totalorder %s122, 1
                  %s127 = sphi %s87, %s87
                  %s128 = sphi %s84, %s84
                $region46: #{tpu_custom_call.1} parent=42 // loop_header_branch
                  %125 = sbr.rel (%p123) target = $region50
                $region47: #{tpu_custom_call.1} parent=42 // loop_body
                  %v129 = vld [vmem:[%s127] sm:$0xff]
                  %130 = vst [vmem:[%s128] sm:$0xff] %v129
                  %v131 = vld [vmem:[%s127 + $0x8] sm:$0xff]
                  %132 = vst [vmem:[%s128 + $0x8] sm:$0xff] %v131
                  %v133 = vld [vmem:[%s127 + $0x80] sm:$0xff]
                  %134 = vst [vmem:[%s128 + $0x10] sm:$0xff] %v133
                  %v135 = vld [vmem:[%s127 + $0x88] sm:$0xff]
                  %136 = vst [vmem:[%s128 + $0x18] sm:$0xff] %v135
                  %v137 = vld [vmem:[%s127 + $0x100] sm:$0xff]
                  %138 = vst [vmem:[%s128 + $0x20] sm:$0xff] %v137
                  %v139 = vld [vmem:[%s127 + $0x108] sm:$0xff]
                  %140 = vst [vmem:[%s128 + $0x28] sm:$0xff] %v139
                  %v141 = vld [vmem:[%s127 + $0x180] sm:$0xff]
                  %142 = vst [vmem:[%s128 + $0x30] sm:$0xff] %v141
                  %v143 = vld [vmem:[%s127 + $0x188] sm:$0xff]
                  %144 = vst [vmem:[%s128 + $0x38] sm:$0xff] %v143
                $region48: #{tpu_custom_call.1} parent=42 // loop_footer
                  %s126 = sadd.s32 1, %s122
                $region49: #{tpu_custom_call.1} parent=42 // loop_footer_branch
                  %121 = sbr.rel target = $region45
                $region50: #{tpu_custom_call.1} parent=42 // loop_exit
                  _
              $region43: #{tpu_custom_call.1} parent=27 // pred_fallthru
                _
              // Predicated region
              $region51: #{tpu_custom_call.1} parent=27 // pred_check
                _
              $region52: #{tpu_custom_call.1} parent=27 // pred_check_branch
                %146 = sbr.rel target = $region54
              $region53: #{tpu_custom_call.1} parent=27 // pred_region
                _
              $region54: #{tpu_custom_call.1} parent=27 // pred_fallthru
                _
            $region28: #{tpu_custom_call.1} parent=23 // pred_fallthru
              _
            // Predicated region
            $region29: #{tpu_custom_call.1} parent=23 // pred_check
              _
            $region30: #{tpu_custom_call.1} parent=23 // pred_check_branch
              %93 = sbr.rel target = $region32
            $region31: #{tpu_custom_call.1} parent=23 // pred_region
              loop: start=0, step=1, limit=1
              $region33: #{tpu_custom_call.1} parent=31 // loop_pre_header
                _
              $region34: #{tpu_custom_call.1} parent=31 // loop_header
                %s96 = sphi 0, %s100
                %p97 = scmp.ge.s32.totalorder %s96, 1
                %s101 = sphi %s87, %s87
                %s102 = sphi %s84, %s84
              $region35: #{tpu_custom_call.1} parent=31 // loop_header_branch
                %99 = sbr.rel (%p97) target = $region39
              $region36: #{tpu_custom_call.1} parent=31 // loop_body
                %v103 = vld [vmem:[%s101] sm:$0xff]
                %104 = vst [vmem:[%s102] sm:$0xff] %v103
                %v105 = vld [vmem:[%s101 + $0x8] sm:$0xff]
                %106 = vst [vmem:[%s102 + $0x8] sm:$0xff] %v105
                %v107 = vld [vmem:[%s101 + $0x80] sm:$0xff]
                %108 = vst [vmem:[%s102 + $0x10] sm:$0xff] %v107
                %v109 = vld [vmem:[%s101 + $0x88] sm:$0xff]
                %110 = vst [vmem:[%s102 + $0x18] sm:$0xff] %v109
                %v111 = vld [vmem:[%s101 + $0x100] sm:$0xff]
                %112 = vst [vmem:[%s102 + $0x20] sm:$0xff] %v111
                %v113 = vld [vmem:[%s101 + $0x108] sm:$0xff]
                %114 = vst [vmem:[%s102 + $0x28] sm:$0xff] %v113
                %v115 = vld [vmem:[%s101 + $0x180] sm:$0xff]
                %116 = vst [vmem:[%s102 + $0x30] sm:$0xff] %v115
                %v117 = vld [vmem:[%s101 + $0x188] sm:$0xff]
                %118 = vst [vmem:[%s102 + $0x38] sm:$0xff] %v117
              $region37: #{tpu_custom_call.1} parent=31 // loop_footer
                %s100 = sadd.s32 1, %s96
              $region38: #{tpu_custom_call.1} parent=31 // loop_footer_branch
                %95 = sbr.rel target = $region34
              $region39: #{tpu_custom_call.1} parent=31 // loop_exit
                _
            $region32: #{tpu_custom_call.1} parent=23 // pred_fallthru
              _
          $region24: #{tpu_custom_call.1} parent=19 // pred_fallthru
            _
          %147 = vnop
        $region20: #{tpu_custom_call.1} parent=15 // pred_fallthru
          _
      $region16: #{tpu_custom_call.1} parent=5 // pred_fallthru
        _
      %p148 = scmp.le.s32.totalorder 1, %s7
      %p149 = scmp.lt.s32.totalorder %s7, 9
      %p150 = pnand %p148, %p149
      %p151 = pneg %p150
      // Predicated region
      $region55: #{tpu_custom_call.1} parent=5 // pred_check
        _
      $region56: #{tpu_custom_call.1} parent=5 // pred_check_branch
        %153 = sbr.rel (%p150) target = $region58
      $region57: #{tpu_custom_call.1} parent=5 // pred_region
        %s154 = ssub.s32 %s7, 1
        %s155 = sand.u32 %s20, 1
        %s156 = sand.u32 %s20, 1
        %s157 = smul.addr %s156, 64
        %s158 = scalar_lea.vmem [#allocation2], %s157
        // Predicated region
        $region59: #{tpu_custom_call.1} parent=57 // pred_check
          %p159 = pneg %p33
        $region60: #{tpu_custom_call.1} parent=57 // pred_check_branch
          %161 = sbr.rel (%p159) target = $region62
        $region61: #{tpu_custom_call.1} parent=57 // pred_region
          _
        $region62: #{tpu_custom_call.1} parent=57 // pred_fallthru
          _
        %s162 = sand.u32 %s20, 1
        %s163 = sand.u32 %s20, 1
        %s164 = smul.addr %s163, 64
        %s165 = scalar_lea.vmem [#allocation2], %s164
        %p166 = pneg %p33
        %p167 = pneg %p30
        %p168 = pneg %p59
        %p169 = pneg %p56
        %s170 = sand.u32 %s46, 1
        %s171 = sand.u32 %s46, 1
        %s172 = smul.addr %s171, 64
        %s173 = scalar_lea.vmem [#allocation3], %s172
        %s174 = smul.u32 2, %s12
        %s175 = smul.u32 2, %s12
        %v176 = vld [vmem:[%s158] sm:$0xff]
        %v177 = vld [vmem:[%s158 + $0x8] sm:$0xff]
        %s178 = scalar_lea.vmem %s158, 16 [#allocation2]
        %v179 = vld [vmem:[%s178] sm:$0xff]
        %v180 = vld [vmem:[%s178 + $0x8] sm:$0xff]
        %s181 = scalar_lea.vmem %s158, 32 [#allocation2]
        %v182 = vld [vmem:[%s181] sm:$0xff]
        %v183 = vld [vmem:[%s181 + $0x8] sm:$0xff]
        %s184 = scalar_lea.vmem %s158, 48 [#allocation2]
        %v185 = vld [vmem:[%s184] sm:$0xff]
        %v186 = vld [vmem:[%s184 + $0x8] sm:$0xff]
        %v187 = vadd.f32 %v176, %v179
        %v188 = vadd.f32 %v177, %v180
        %v189 = vmul.f32 %v187, 0.5
        %v190 = vmul.f32 %v188, 0.5
        %v191 = vsub.f32 %v176, %v179
        %v192 = vsub.f32 %v177, %v180
        %v193 = vmul.f32 %v191, 0.5
        %v194 = vmul.f32 %v192, 0.5
        %v195 = vadd.f32 %v182, %v185
        %v196 = vadd.f32 %v183, %v186
        %v197 = vmul.f32 %v195, 0.5
        %v198 = vmul.f32 %v196, 0.5
        %v199 = vsub.f32 %v182, %v185
        %v200 = vsub.f32 %v183, %v186
        %v201 = vmul.f32 %v199, 0.5
        %v202 = vmul.f32 %v200, 0.5
        %v203 = vsub.f32 %v193, %v201
        %v204 = vsub.f32 %v194, %v202
        %vm205 = vcmask 130048
        %206 = vst.msk [vmem:[%s173] sm:$0xff] %vm205, %v203
        %207 = vst.msk [vmem:[%s173 + $0x8] sm:$0xff] %vm205, %v204
        %v208 = vsub.f32 %v189, %v197
        %v209 = vsub.f32 %v190, %v198
        %s210 = scalar_lea.vmem %s173, 16 [#allocation3]
        %211 = vst.msk [vmem:[%s210] sm:$0xff] %vm205, %v208
        %212 = vst.msk [vmem:[%s210 + $0x8] sm:$0xff] %vm205, %v209
        %v213 = vadd.f32 %v193, %v201
        %v214 = vadd.f32 %v194, %v202
        %s215 = scalar_lea.vmem %s173, 32 [#allocation3]
        %216 = vst.msk [vmem:[%s215] sm:$0xff] %vm205, %v213
        %217 = vst.msk [vmem:[%s215 + $0x8] sm:$0xff] %vm205, %v214
        %v218 = vadd.f32 %v189, %v197
        %v219 = vadd.f32 %v190, %v198
        %s220 = scalar_lea.vmem %s173, 48 [#allocation3]
        %221 = vst.msk [vmem:[%s220] sm:$0xff] %vm205, %v218
        %222 = vst.msk [vmem:[%s220 + $0x8] sm:$0xff] %vm205, %v219
        %s223 = sand.u32 %s46, 1
        %s224 = sand.u32 %s46, 1
        %s225 = smul.addr %s224, 64
        %s226 = scalar_lea.vmem [#allocation3], %s225
        // Predicated region
        $region63: #{tpu_custom_call.1} parent=57 // pred_check
          %p227 = pneg %p56
        $region64: #{tpu_custom_call.1} parent=57 // pred_check_branch
          %229 = sbr.rel (%p227) target = $region66
        $region65: #{tpu_custom_call.1} parent=57 // pred_region
          %s230 = smul.u32 2, %s12
          %s231 = smul.addr %s230, 8
          %s232 = scalar_lea.vmem %s1, %s231
          // Predicated region
          $region67: #{tpu_custom_call.1} parent=65 // pred_check
            _
          $region68: #{tpu_custom_call.1} parent=65 // pred_check_branch
            %234 = sbr.rel (0) target = $region70
          $region69: #{tpu_custom_call.1} parent=65 // pred_region
            // Predicated region
            $region71: #{tpu_custom_call.1} parent=69 // pred_check
              _
            $region72: #{tpu_custom_call.1} parent=69 // pred_check_branch
              %236 = sbr.rel (0) target = $region74
            $region73: #{tpu_custom_call.1} parent=69 // pred_region
              // Predicated region
              $region86: #{tpu_custom_call.1} parent=73 // pred_check
                _
              $region87: #{tpu_custom_call.1} parent=73 // pred_check_branch
                %265 = sbr.rel (0) target = $region89
              $region88: #{tpu_custom_call.1} parent=73 // pred_region
                loop: start=0, step=1, limit=1
                $region90: #{tpu_custom_call.1} parent=88 // loop_pre_header
                  _
                $region91: #{tpu_custom_call.1} parent=88 // loop_header
                  %s267 = sphi 0, %s271
                  %p268 = scmp.ge.s32.totalorder %s267, 1
                  %s272 = sphi %s226, %s226
                  %s273 = sphi %s232, %s232
                $region92: #{tpu_custom_call.1} parent=88 // loop_header_branch
                  %270 = sbr.rel (%p268) target = $region96
                $region93: #{tpu_custom_call.1} parent=88 // loop_body
                  %v274 = vld [vmem:[%s272] sm:$0xff]
                  %275 = vst [vmem:[%s273] sm:$0xff] %v274
                  %v276 = vld [vmem:[%s272 + $0x8] sm:$0xff]
                  %277 = vst [vmem:[%s273 + $0x8] sm:$0xff] %v276
                  %v278 = vld [vmem:[%s272 + $0x10] sm:$0xff]
                  %279 = vst [vmem:[%s273 + $0x80] sm:$0xff] %v278
                  %v280 = vld [vmem:[%s272 + $0x18] sm:$0xff]
                  %281 = vst [vmem:[%s273 + $0x88] sm:$0xff] %v280
                  %v282 = vld [vmem:[%s272 + $0x20] sm:$0xff]
                  %283 = vst [vmem:[%s273 + $0x100] sm:$0xff] %v282
                  %v284 = vld [vmem:[%s272 + $0x28] sm:$0xff]
                  %285 = vst [vmem:[%s273 + $0x108] sm:$0xff] %v284
                  %v286 = vld [vmem:[%s272 + $0x30] sm:$0xff]
                  %287 = vst [vmem:[%s273 + $0x180] sm:$0xff] %v286
                  %v288 = vld [vmem:[%s272 + $0x38] sm:$0xff]
                  %289 = vst [vmem:[%s273 + $0x188] sm:$0xff] %v288
                $region94: #{tpu_custom_call.1} parent=88 // loop_footer
                  %s271 = sadd.s32 1, %s267
                $region95: #{tpu_custom_call.1} parent=88 // loop_footer_branch
                  %266 = sbr.rel target = $region91
                $region96: #{tpu_custom_call.1} parent=88 // loop_exit
                  _
              $region89: #{tpu_custom_call.1} parent=73 // pred_fallthru
                _
              // Predicated region
              $region97: #{tpu_custom_call.1} parent=73 // pred_check
                _
              $region98: #{tpu_custom_call.1} parent=73 // pred_check_branch
                %291 = sbr.rel target = $region100
              $region99: #{tpu_custom_call.1} parent=73 // pred_region
                _
              $region100: #{tpu_custom_call.1} parent=73 // pred_fallthru
                _
            $region74: #{tpu_custom_call.1} parent=69 // pred_fallthru
              _
            // Predicated region
            $region75: #{tpu_custom_call.1} parent=69 // pred_check
              _
            $region76: #{tpu_custom_call.1} parent=69 // pred_check_branch
              %238 = sbr.rel target = $region78
            $region77: #{tpu_custom_call.1} parent=69 // pred_region
              loop: start=0, step=1, limit=1
              $region79: #{tpu_custom_call.1} parent=77 // loop_pre_header
                _
              $region80: #{tpu_custom_call.1} parent=77 // loop_header
                %s241 = sphi 0, %s245
                %p242 = scmp.ge.s32.totalorder %s241, 1
                %s246 = sphi %s226, %s226
                %s247 = sphi %s232, %s232
              $region81: #{tpu_custom_call.1} parent=77 // loop_header_branch
                %244 = sbr.rel (%p242) target = $region85
              $region82: #{tpu_custom_call.1} parent=77 // loop_body
                %v248 = vld [vmem:[%s246] sm:$0xff]
                %249 = vst [vmem:[%s247] sm:$0xff] %v248
                %v250 = vld [vmem:[%s246 + $0x8] sm:$0xff]
                %251 = vst [vmem:[%s247 + $0x8] sm:$0xff] %v250
                %v252 = vld [vmem:[%s246 + $0x10] sm:$0xff]
                %253 = vst [vmem:[%s247 + $0x80] sm:$0xff] %v252
                %v254 = vld [vmem:[%s246 + $0x18] sm:$0xff]
                %255 = vst [vmem:[%s247 + $0x88] sm:$0xff] %v254
                %v256 = vld [vmem:[%s246 + $0x20] sm:$0xff]
                %257 = vst [vmem:[%s247 + $0x100] sm:$0xff] %v256
                %v258 = vld [vmem:[%s246 + $0x28] sm:$0xff]
                %259 = vst [vmem:[%s247 + $0x108] sm:$0xff] %v258
                %v260 = vld [vmem:[%s246 + $0x30] sm:$0xff]
                %261 = vst [vmem:[%s247 + $0x180] sm:$0xff] %v260
                %v262 = vld [vmem:[%s246 + $0x38] sm:$0xff]
                %263 = vst [vmem:[%s247 + $0x188] sm:$0xff] %v262
              $region83: #{tpu_custom_call.1} parent=77 // loop_footer
                %s245 = sadd.s32 1, %s241
              $region84: #{tpu_custom_call.1} parent=77 // loop_footer_branch
                %240 = sbr.rel target = $region80
              $region85: #{tpu_custom_call.1} parent=77 // loop_exit
                _
            $region78: #{tpu_custom_call.1} parent=69 // pred_fallthru
              _
          $region70: #{tpu_custom_call.1} parent=65 // pred_fallthru
            _
          %292 = vnop
        $region66: #{tpu_custom_call.1} parent=57 // pred_fallthru
          _
      $region58: #{tpu_custom_call.1} parent=5 // pred_fallthru
        _
      %p293 = scmp.le.s32.totalorder 2, %s7
      // Predicated region
      $region101: #{tpu_custom_call.1} parent=5 // pred_check
        %p294 = pneg %p293
      $region102: #{tpu_custom_call.1} parent=5 // pred_check_branch
        %296 = sbr.rel (%p294) target = $region104
      $region103: #{tpu_custom_call.1} parent=5 // pred_region
        %s297 = ssub.s32 %s7, 2
        // Predicated region
        $region105: #{tpu_custom_call.1} parent=103 // pred_check
          %p298 = pneg %p62
        $region106: #{tpu_custom_call.1} parent=103 // pred_check_branch
          %300 = sbr.rel (%p298) target = $region108
        $region107: #{tpu_custom_call.1} parent=103 // pred_region
          %s301 = sand.u32 %s47, 1
          %s302 = sand.u32 %s47, 1
          %s303 = smul.addr %s302, 64
          %s304 = scalar_lea.vmem [#allocation3], %s303
        $region108: #{tpu_custom_call.1} parent=103 // pred_fallthru
          _
      $region104: #{tpu_custom_call.1} parent=5 // pred_fallthru
        _
    $region6: #{tpu_custom_call.1} parent=1 // loop_footer
      %s11 = sadd.s32 1, %s7
    $region7: #{tpu_custom_call.1} parent=1 // loop_footer_branch
      %6 = sbr.rel target = $region3
    $region8: #{tpu_custom_call.1} parent=1 // loop_exit
      _

</llo_original>
